<compile_context>
chip_gen: v5e
topology: v5e:2x2
jax: 0.10.0
libtpu: 0.0.40
codegen_flags: <defaults>
</compile_context>

<pallas_src>
import functools

import numpy as np
import jax
import jax.numpy as jnp
from jax.experimental import pallas as pl
from jax.experimental.pallas import tpu as pltpu


_LANES = 128           # vreg lane width
_MAX_TILE_ROWS = 8192  # 4 MiB f32 input block; ~10 MiB double-buffered footprint
                       # (safe for v5e 16 MiB / v6e 32 MiB / v7x 32 MiB scoped VMEM)


# ----------------------------------------------------------------------------
# Pallas kernel: lane-dense elementwise thresholding -> int8 class index
# ----------------------------------------------------------------------------
def _class_kernel(thr_ref, ent_ref, cls_ref):
    # thr_ref: SMEM (2,) float32  -> [threshold_fine, threshold_median]
    # ent_ref: VMEM (tile_rows, 128) input float dtype
    # cls_ref: VMEM (tile_rows, 128) int8   (0=coarse, 1=median, 2=fine)
    thr_fine = thr_ref[0]
    thr_median = thr_ref[1]
    e = ent_ref[...].astype(jnp.float32)           # in-register upcast (free on VPU)
    cls_i32 = (e > thr_median).astype(jnp.int32) + (e > thr_fine).astype(jnp.int32)
    cls_ref[...] = cls_i32.astype(jnp.int8)        # single pack at the store


# ----------------------------------------------------------------------------
# Fused (jitted) gate computation: pad-tail -> pallas_call -> strip -> one-hot
# ----------------------------------------------------------------------------
@functools.partial(jax.jit, static_argnums=(2,))
def _gate_from_threshold(entropy, thresholds, max_tile_rows):
    """entropy: arbitrary-shape float array; thresholds: (2,) f32 [fine, median].

    Returns gate of shape entropy.shape + (3,), int32 one-hot [coarse, median, fine].
    """
    orig_shape = entropy.shape
    n = int(np.prod(orig_shape)) if orig_shape else 1
    rows = pl.cdiv(n, _LANES)

    # Keep native float dtype (bf16 stays bf16); only non-floats get promoted.
    if not jnp.issubdtype(entropy.dtype, jnp.floating):
        entropy = entropy.astype(jnp.float32)

    flat = entropy.reshape(-1)
    if n != rows * _LANES:
        # Only the <=127-element lane tail is ever padded.
        flat = jnp.pad(flat, (0, rows * _LANES - n))
    flat2d = flat.reshape(rows, _LANES)

    # Single block for small inputs; 8192-row tiles (ragged last block) otherwise.
    tile_rows = rows if rows <= max_tile_rows else max_tile_rows
    grid_len = pl.cdiv(rows, tile_rows)

    cls = pl.pallas_call(
        _class_kernel,
        out_shape=jax.ShapeDtypeStruct((rows, _LANES), jnp.int8),
        grid_spec=pltpu.PrefetchScalarGridSpec(
            num_scalar_prefetch=1,  # thresholds -> SMEM (scalar broadcast, no VMEM DMA)
            grid=(grid_len,),
            in_specs=[pl.BlockSpec((tile_rows, _LANES), lambda r, thr: (r, 0))],
            out_specs=pl.BlockSpec((tile_rows, _LANES), lambda r, thr: (r, 0)),
        ),
        compiler_params=pltpu.CompilerParams(
            dimension_semantics=("parallel",),  # shards across v7x TensorCores
        ),
    )(thresholds.astype(jnp.float32), flat2d)

    # Strip padding and expand the class index to the PyTorch [..., 3] int32
    # one-hot layout (last dim 3 is inherently lane-sparse, so this relayout
    # stays outside the kernel; it is fused into this jit).
    cls = cls.reshape(-1)[:n].reshape(orig_shape)
    # TODO(synk): downstream consumers accepting int8/bool could skip this int32 cast.
    gate = (cls[..., None] == jnp.arange(3, dtype=jnp.int8)).astype(jnp.int32)
    return gate


# ----------------------------------------------------------------------------
# Router (parameters / thresholds built deterministically in-script)
# ----------------------------------------------------------------------------
class TripleGrainDynamicEntropyRouter:
    def __init__(self,
                 fine_grain_ratio_min=0.01, fine_grain_ratio_max=0.99,
                 median_grain_ratio_min=0.01, median_grain_ratio_max=0.99,
                 seed=0):
        # Synthetic entropy-threshold table (stand-in for the JSON file):
        # monotone decreasing in ratio, spanning a plausible entropy range.
        self.entropy_thresholds = {
            str(i): float(5.0 * (1.0 - i / 100.0)) for i in range(101)
        }
        self.fine_grain_ratio_min = int(fine_grain_ratio_min * 100)
        self.fine_grain_ratio_max = int(fine_grain_ratio_max * 100) + 1
        self.median_grain_ratio_min = int(median_grain_ratio_min * 100)
        self.median_grain_ratio_max = int(median_grain_ratio_max * 100) + 1
        self._rng = np.random.default_rng(seed)  # deterministic "np.random"
        self.last_threshold_fine = None
        self.last_threshold_median = None

    def forward(self, h_fine=None, h_median=None, h_coarse=None, entropy=None):
        fine_grain_ratio_max = min(self.fine_grain_ratio_max,
                                   100 - self.median_grain_ratio_min)
        fine_grain_ratio = int(self._rng.integers(self.fine_grain_ratio_min,
                                                  fine_grain_ratio_max))
        median_grain_ratio_max = min(self.median_grain_ratio_max,
                                     100 - fine_grain_ratio)
        if self.median_grain_ratio_min >= median_grain_ratio_max:
            median_grain_ratio_max = self.median_grain_ratio_min + 1
            print('Adjusted median_grain_ratio_max to ensure valid range')
        median_grain_ratio = int(self._rng.integers(self.median_grain_ratio_min,
                                                    median_grain_ratio_max))
        total_ratio = fine_grain_ratio + median_grain_ratio
        if total_ratio >= 100:
            total_ratio = 99
            median_grain_ratio = total_ratio - fine_grain_ratio
        fine_grain_threshold = self.entropy_thresholds[str(fine_grain_ratio)]
        median_grain_threshold = self.entropy_thresholds[str(total_ratio)]
        # The compact class-index kernel requires thr_fine >= thr_median
        # (holds for any monotone-decreasing threshold table).
        assert fine_grain_threshold >= median_grain_threshold, (
            "entropy_thresholds must be monotone: thr_fine >= thr_median")
        self.last_threshold_fine = fine_grain_threshold
        self.last_threshold_median = median_grain_threshold
        thresholds = jnp.asarray([fine_grain_threshold, median_grain_threshold],
                                 dtype=jnp.float32)
        return _gate_from_threshold(entropy, thresholds, _MAX_TILE_ROWS)


# ----------------------------------------------------------------------------
# Pure-JAX reference for correctness check
# ----------------------------------------------------------------------------
def _gate_ref(entropy, thr_fine, thr_median):
    entropy = entropy.astype(jnp.float32)
    fine = (entropy > thr_fine).astype(jnp.int32)[..., None]
    median = ((entropy <= thr_fine) & (entropy > thr_median)).astype(jnp.int32)[..., None]
    coarse = (entropy <= thr_median).astype(jnp.int32)[..., None]
    return jnp.concatenate([coarse, median, fine], axis=-1)


if __name__ == "__main__":
    key = jax.random.PRNGKey(0)
    router = TripleGrainDynamicEntropyRouter(seed=0)

    # Small shapes through the router: main case + one that exercises the
    # non-multiple-of-128 lane-tail padding.
    for shape in [(2, 16, 16), (3, 17, 23)]:
        key, k = jax.random.split(key)
        entropy = jax.random.uniform(k, shape, dtype=jnp.float32,
                                     minval=0.0, maxval=5.0)

        gate = router.forward(entropy=entropy)
        gate = jax.block_until_ready(gate)

        assert gate.shape == shape + (3,), gate.shape
        assert gate.dtype == jnp.int32

        ref = _gate_ref(entropy,
                        router.last_threshold_fine,
                        router.last_threshold_median)
        np.testing.assert_array_equal(np.asarray(gate), np.asarray(ref))
        # exactly one gate active per position
        np.testing.assert_array_equal(np.asarray(gate).sum(-1),
                                      np.ones(shape, np.int32))

    # Exercise the tiled path with a ragged last block (rows=50, tile_rows=32)
    # without needing a huge input, by shrinking the static tile cap.
    key, k = jax.random.split(key)
    shape = (4, 40, 40)
    entropy = jax.random.uniform(k, shape, dtype=jnp.float32,
                                 minval=0.0, maxval=5.0)
    thr_fine, thr_median = 3.0, 1.5
    thresholds = jnp.asarray([thr_fine, thr_median], dtype=jnp.float32)
    gate = jax.block_until_ready(_gate_from_threshold(entropy, thresholds, 32))
    ref = _gate_ref(entropy, thr_fine, thr_median)
    np.testing.assert_array_equal(np.asarray(gate), np.asarray(ref))

    print("KERNEL_OK")
</pallas_src>

<mosaic_0001>
module attributes {stable_mosaic.version = 11 : i64} {
  func.func @_class_kernel(%arg0: i32, %arg1: memref<2xf32, #tpu.memory_space<smem>>, %arg2: memref<4x128xf32, #tpu.memory_space<vmem>>, %arg3: memref<4x128xi8, #tpu.memory_space<vmem>>) attributes {dimension_semantics = [#tpu.dimension_semantics<parallel>], iteration_bounds = array<i64: 1>, scalar_prefetch = 1 : i64, scratch_operands = 0 : i64, tpu.core_type = #tpu.core_type<tc>, window_params = [{transform_indices = @transform_0, window_bounds = array<i64: 4, 128>}, {transform_indices = @transform_1, window_bounds = array<i64: 4, 128>}]} {
    %c0 = arith.constant 0 : index
    %0 = memref.load %arg1[%c0] : memref<2xf32, #tpu.memory_space<smem>>
    %c1 = arith.constant 1 : index
    %1 = memref.load %arg1[%c1] : memref<2xf32, #tpu.memory_space<smem>>
    %c0_0 = arith.constant 0 : index
    %c0_1 = arith.constant 0 : index
    %2 = vector.load %arg2[%c0_0, %c0_1] : memref<4x128xf32, #tpu.memory_space<vmem>>, vector<4x128xf32>
    %3 = vector.broadcast %1 : f32 to vector<4x128xf32>
    %4 = arith.cmpf ogt, %2, %3 : vector<4x128xf32>
    %5 = arith.extui %4 : vector<4x128xi1> to vector<4x128xi32>
    %6 = vector.broadcast %0 : f32 to vector<4x128xf32>
    %7 = arith.cmpf ogt, %2, %6 : vector<4x128xf32>
    %8 = arith.extui %7 : vector<4x128xi1> to vector<4x128xi32>
    %9 = arith.addi %5, %8 : vector<4x128xi32>
    %10 = arith.trunci %9 : vector<4x128xi32> to vector<4x128xi8>
    %c0_2 = arith.constant 0 : index
    %c0_3 = arith.constant 0 : index
    %11 = vector.load %arg3[%c0_2, %c0_3] : memref<4x128xi8, #tpu.memory_space<vmem>>, vector<4x128xi8>
    tpu.vector_store %arg3[%c0_2, %c0_3], %10 {strides = array<i32>} : memref<4x128xi8, #tpu.memory_space<vmem>>, vector<4x128xi8>,
    return
  }
  func.func @transform_0(%arg0: i32, %arg1: memref<2xf32, #tpu.memory_space<smem>>) -> (i32, i32) {
    %c0_i32 = arith.constant 0 : i32
    %c0_i32_0 = arith.constant 0 : i32
    return %arg0, %c0_i32 : i32, i32
  }
  func.func @transform_1(%arg0: i32, %arg1: memref<2xf32, #tpu.memory_space<smem>>) -> (i32, i32) {
    %c0_i32 = arith.constant 0 : i32
    %c0_i32_0 = arith.constant 0 : i32
    return %arg0, %c0_i32 : i32, i32
  }
}

</mosaic_0001>

<llo_original>
// kernel: eq.8
$region0: #{eq.8}
  %s0 = inlined_call_operand.vmem [shape: s8[4,128], index: 0, kind: input, shape index: {}]
  %s1 = inlined_call_operand.vmem [shape: s8[2,16,16], index: 1, kind: output, shape index: {}]
  $region1: #{eq.8} parent=0
    #allocation0 [shape = 'u8[16384]{0}', space=vmem, size = 0x4000, scoped, tag = 'scoped mem for output reshape']
    #allocation1 [shape = 'u8[4096]{0}', space=vmem, size = 0x1000, scoped, tag = 'scoped mem for input reshape']
    %s3 = ssub.s32 16, 1
    %s4 = sand.u32 %s3, 15
    %p5 = scmp.ne.s32.totalorder %s4, 0
    %s6 = scalar_select %p5, 1, 0
    %s7 = sand.u32 %s3, 240
    %p8 = scmp.ne.s32.totalorder %s7, 0
    %s9 = scalar_select %p8, 2, 0
    %s10 = sor.u32 %s6, %s9
    %v11 = vld [vmem:[%s0] sm:%s10]
    %v12 = vunpack.c.0.s8 %v11
    %v13 = vunpack.c.1.s8 %v11
    %v14 = vunpack.c.2.s8 %v11
    %v15 = vunpack.c.3.s8 %v11
    %16 = vst [vmem:[#allocation1] sm:%s3] %v12
    %v17 = vld [vmem:[#allocation1] sm:$0xf]
    %vm18 = vcmask 130048
    %19 = vst.msk [vmem:[#allocation0] ss:$8 sm:$0xf] %vm18, %v17
    %v20 = vld [vmem:[#allocation1] sm:$0xf]
    %21 = vrot.lane.b32.xlu0 %v20, 112
    %v22 = vpop.permute.xlu0 %21
    %vm23 = vcmask 130048
    %s24 = scalar_lea.vmem [#allocation0], 1
    %25 = vst.msk [vmem:[%s24] ss:$8 sm:$0xf] %vm23, %v22
    %v26 = vld [vmem:[#allocation1] sm:$0xf]
    %27 = vrot.lane.b32.xlu0 %v26, 96
    %v28 = vpop.permute.xlu0 %27
    %vm29 = vcmask 130048
    %s30 = scalar_lea.vmem [#allocation0], 2
    %31 = vst.msk [vmem:[%s30] ss:$8 sm:$0xf] %vm29, %v28
    %v32 = vld [vmem:[#allocation1] sm:$0xf]
    %33 = vrot.lane.b32.xlu0 %v32, 80
    %v34 = vpop.permute.xlu0 %33
    %vm35 = vcmask 130048
    %s36 = scalar_lea.vmem [#allocation0], 3
    %37 = vst.msk [vmem:[%s36] ss:$8 sm:$0xf] %vm35, %v34
    %v38 = vld [vmem:[#allocation1] sm:$0xf]
    %39 = vrot.lane.b32.xlu0 %v38, 64
    %v40 = vpop.permute.xlu0 %39
    %vm41 = vcmask 130048
    %s42 = scalar_lea.vmem [#allocation0], 4
    %43 = vst.msk [vmem:[%s42] ss:$8 sm:$0xf] %vm41, %v40
    %v44 = vld [vmem:[#allocation1] sm:$0xf]
    %45 = vrot.lane.b32.xlu0 %v44, 48
    %v46 = vpop.permute.xlu0 %45
    %vm47 = vcmask 130048
    %s48 = scalar_lea.vmem [#allocation0], 5
    %49 = vst.msk [vmem:[%s48] ss:$8 sm:$0xf] %vm47, %v46
    %v50 = vld [vmem:[#allocation1] sm:$0xf]
    %51 = vrot.lane.b32.xlu0 %v50, 32
    %v52 = vpop.permute.xlu0 %51
    %vm53 = vcmask 130048
    %s54 = scalar_lea.vmem [#allocation0], 6
    %55 = vst.msk [vmem:[%s54] ss:$8 sm:$0xf] %vm53, %v52
    %v56 = vld [vmem:[#allocation1] sm:$0xf]
    %57 = vrot.lane.b32.xlu0 %v56, 16
    %v58 = vpop.permute.xlu0 %57
    %vm59 = vcmask 130048
    %s60 = scalar_lea.vmem [#allocation0], 7
    %61 = vst.msk [vmem:[%s60] ss:$8 sm:$0xf] %vm59, %v58
    %s63 = ssub.s32 256, 1
    %v64 = vld [vmem:[#allocation0] sm:%s63]
    %s66 = ssub.s32 4, 1
    %v67 = vpack.c.b16 0, %v64
    %v68 = vpack.c.b8 0, %v67
    %69 = vst [vmem:[%s1] sm:%s66] %v68
    %s70 = scalar_lea.vmem [#allocation0], 8
    %v71 = vld [vmem:[%s70] sm:%s63]
    %s73 = ssub.s32 4, 1
    %s74 = scalar_lea.vmem %s1, 2
    %v75 = vpack.c.b16 0, %v71
    %v76 = vpack.c.b8 0, %v75
    %77 = vst [vmem:[%s74] sm:%s73] %v76
    %s78 = scalar_lea.vmem [#allocation0], 16
    %v79 = vld [vmem:[%s78] sm:%s63]
    %s81 = ssub.s32 4, 1
    %s82 = scalar_lea.vmem %s1, 4
    %v83 = vpack.c.b16 0, %v79
    %v84 = vpack.c.b8 0, %v83
    %85 = vst [vmem:[%s82] sm:%s81] %v84
    %s86 = scalar_lea.vmem [#allocation0], 24
    %v87 = vld [vmem:[%s86] sm:%s63]
    %s89 = ssub.s32 4, 1
    %s90 = scalar_lea.vmem %s1, 6
    %v91 = vpack.c.b16 0, %v87
    %v92 = vpack.c.b8 0, %v91
    %93 = vst [vmem:[%s90] sm:%s89] %v92

// kernel: _gate_from_threshold.1
$region0: #{_gate_from_threshold.1}
  #allocation0 [shape = 'u32[]', space=smem, size = 0x4, offset = 0x4, fixed_abs, tag = 'smem constant byte address 0x4 - core index']
  #allocation1 [shape = 'u32[72,128]{1,0:T(1,128)}', space=vmem, size = 0x9000, scoped, tag = 'internal scratch']
  #allocation2 [shape = 's32[1]{0}', space=sflag, size = 0x4, scoped, tag = 'scoped memory for _gate_from_threshold.1']
  #allocation3 [shape = 'u8[512]{0}', space=smem, size = 0x200, scoped, tag = 'prefetched SMEM operand 0']
  %s0 = inlined_call_operand.vmem [shape: f32[2], index: 0, kind: input, shape index: {}]
  %s1 = inlined_call_operand.vmem [shape: f32[4,128], index: 1, kind: input, shape index: {}]
  %s2 = inlined_call_operand.vmem [shape: s8[4,128], index: 2, kind: output, shape index: {}]
  %s3 = sld [smem:[#allocation0]]
  $region14: #{_gate_from_threshold.1} parent=0
    _
  %s5 = ssub.s32 1, %s3
  %s6 = scalar_select 0, %s5, %s3
  %s8 = sshll.u32 %s0, 4
  %s9 = int_to_ptr.vmem [resolvable:$true] %s8
  %11 = dma.vmem_to_smem %s9, 16, [#allocation3], [#allocation2]
  %13 = dma.done [#allocation2], 16
  %14 = sfence
  // Predicated region
  $region2: #{_gate_from_threshold.1} parent=0 // pred_check
    _
  $region3: #{_gate_from_threshold.1} parent=0 // pred_check_branch
    %16 = sbr.rel (0) target = $region5
  $region4: #{_gate_from_threshold.1} parent=0 // pred_region
    _
  $region5: #{_gate_from_threshold.1} parent=0 // pred_fallthru
    _
  %s17 = sld [smem:[#allocation3]]
  %s18 = sld [smem:[#allocation3 + $0x1]]
  %v19 = vld [vmem:[%s1] sm:$0xf]
  %v20 = vstv %s18
  %vm21 = vcmp.gt.f32.partialorder %v19, %v20
  %v22 = vsel %vm21, 1, 0
  %v23 = vstv %s17
  %vm24 = vcmp.gt.f32.partialorder %v19, %v23
  %v25 = vsel %vm24, 1, 0
  %v26 = vadd.s32 %v22, %v25
  %v27 = vpack.c.b16 %v26, %v26
  %v28 = vpack.c.b8 %v27, %v27
  %29 = vst [vmem:[%s2] sm:$0x1] %v28
  // Predicated region
  $region6: #{_gate_from_threshold.1} parent=0 // pred_check
    _
  $region7: #{_gate_from_threshold.1} parent=0 // pred_check_branch
    %31 = sbr.rel (0) target = $region9
  $region8: #{_gate_from_threshold.1} parent=0 // pred_region
    _
  $region9: #{_gate_from_threshold.1} parent=0 // pred_fallthru
    _
  // Predicated region
  $region10: #{_gate_from_threshold.1} parent=0 // pred_check
    _
  $region11: #{_gate_from_threshold.1} parent=0 // pred_check_branch
    %33 = sbr.rel (0) target = $region13
  $region12: #{_gate_from_threshold.1} parent=0 // pred_region
    _
  $region13: #{_gate_from_threshold.1} parent=0 // pred_fallthru
    _

</llo_original>
